<compile_context>
chip_gen: v7x
topology: tpu7x:2x2x1
jax: 0.10.0
libtpu: 0.0.40
codegen_flags: <defaults>
</compile_context>

<pallas_src>
import numpy as np

import jax
import jax.numpy as jnp
from jax import lax
from jax.experimental import pallas as pl
from jax.experimental.pallas import tpu as pltpu


# ----------------------------- host-side matrix construction -----------------------------

def _pool_select_matrix_np(size_in: int) -> np.ndarray:
    """0/1 matrix S (size_out, size_in): S[i, k] = 1 iff k lies in the 3-wide window centered
    at 2*i (padded window [2i-1, 2i+1] intersected with the valid range)."""
    size_out = (size_in + 2 * 1 - 3) // 2 + 1
    centers = np.arange(size_out, dtype=np.int64)[:, None] * 2
    idx = np.arange(size_in, dtype=np.int64)[None, :]
    return (np.abs(idx - centers) <= 1).astype(np.float64)


def _composed_pool_matrix(size_in: int, k: int) -> np.ndarray:
    """Compose k successive pooling selection matrices: returns (size_out_k, size_in) with small
    integer entries (exact)."""
    m = np.eye(size_in, dtype=np.float64)
    cur = size_in
    for _ in range(k):
        s = _pool_select_matrix_np(cur)
        m = s @ m
        cur = s.shape[0]
    return m


def _choose_tb(nc: int, h: int, w: int, ho: int, wo: int,
               in_bytes: int, mat_bytes: int,
               vmem_budget_bytes: int = 24 * 1024 * 1024) -> int:
    """Pick how many (n, c) slices to process per grid step so double-buffered blocks plus f32
    intermediates fit comfortably under the default scoped-VMEM limit on all TPU generations."""
    # Constant per-call VMEM: A_tot and Bt_tot blocks (pipeline may double-buffer them).
    fixed = 2 * (ho * h + w * wo) * mat_bytes
    # Per-slice VMEM: double-buffered input/output blocks + f32 intermediates + broadcast A copy.
    per_slice = (2 * h * w * in_bytes        # input block (double-buffered)
                 + 2 * ho * wo * in_bytes    # output block (double-buffered)
                 + h * wo * 4                # W-contracted intermediate (f32)
                 + ho * h * mat_bytes        # A broadcast across the batch
                 + ho * wo * 4)              # f32 result before the output cast
    tb = (vmem_budget_bytes - fixed) // per_slice
    return int(max(1, min(nc, tb)))


# ------------------------------------- Pallas kernel --------------------------------------

def _pyramid_kernel(a_ref, bt_ref, x_ref, o_ref):
    # a_ref:  (Ho, H)      composed row map, 1/9**k scale already folded in
    # bt_ref: (W, Wo)      composed column map (already transposed)
    # x_ref:  (TB, H, W)   TB flattened (n, c) slices
    # o_ref:  (TB, Ho, Wo)
    tb, h, w = x_ref.shape
    ho = a_ref.shape[0]
    wo = bt_ref.shape[1]

    x = x_ref[...]
    # (1) W-contraction: one large (TB*H, W) @ (W, Wo) MXU matmul (flop-dominant, big M-dim).
    t = jnp.dot(x.reshape(tb * h, w), bt_ref[...],
                preferred_element_type=jnp.float32)               # (TB*H, Wo)
    t = t.reshape(tb, h, wo).astype(a_ref.dtype)                  # (TB, H, Wo)

    # (2) H-contraction: batched matmul; broadcasting A over the batch avoids any result
    #     transpose inside the kernel (output comes out directly as (TB, Ho, Wo)).
    a_b = jnp.broadcast_to(a_ref[...], (tb, ho, h))               # (TB, Ho, H)
    y = lax.dot_general(a_b, t,
                        dimension_numbers=(((2,), (1,)), ((0,), (0,))),
                        preferred_element_type=jnp.float32)       # (TB, Ho, Wo)

    o_ref[...] = y.astype(o_ref.dtype)


# --------------------------------------- wrapper ------------------------------------------

def input_projection_a(x: jnp.ndarray, sampling_times: int) -> jnp.ndarray:
    """Pallas equivalent of InputProjectionA.forward (NCHW in, NCHW out)."""
    if sampling_times <= 0:
        return x  # empty ModuleList -> identity

    N, C, H, W = x.shape
    NC = N * C

    # Compose the whole pyramid into a single (A_tot, Bt_tot) pair; fold the scale into A_tot.
    a_np = _composed_pool_matrix(H, sampling_times) * (1.0 / 9.0) ** sampling_times
    b_np = _composed_pool_matrix(W, sampling_times)
    Ho, Wo = a_np.shape[0], b_np.shape[0]

    # bf16 matrices when the activations are bf16 (halves matrix traffic, hits the bf16 MXU path);
    # exact f32 otherwise.
    mat_dtype = jnp.bfloat16 if x.dtype == jnp.bfloat16 else jnp.float32
    A = jnp.asarray(a_np, dtype=mat_dtype)        # (Ho, H)
    Bt = jnp.asarray(b_np.T, dtype=mat_dtype)     # (W, Wo)

    xf = x.reshape(NC, H, W)

    in_bytes = int(jnp.dtype(x.dtype).itemsize)
    mat_bytes = int(jnp.dtype(mat_dtype).itemsize)
    tb = _choose_tb(NC, H, W, Ho, Wo, in_bytes, mat_bytes)
    grid = (pl.cdiv(NC, tb),)

    flops = 2 * NC * Wo * H * (W + Ho)
    bytes_accessed = NC * (H * W + Ho * Wo) * in_bytes + (Ho * H + W * Wo) * mat_bytes

    out = pl.pallas_call(
        _pyramid_kernel,
        out_shape=jax.ShapeDtypeStruct((NC, Ho, Wo), x.dtype),
        grid=grid,
        in_specs=[
            pl.BlockSpec((Ho, H), lambda i: (0, 0)),
            pl.BlockSpec((W, Wo), lambda i: (0, 0)),
            pl.BlockSpec((tb, H, W), lambda i: (i, 0, 0)),
        ],
        out_specs=pl.BlockSpec((tb, Ho, Wo), lambda i: (i, 0, 0)),
        compiler_params=pltpu.CompilerParams(dimension_semantics=("parallel",)),
        cost_estimate=pl.CostEstimate(
            flops=flops, transcendentals=0, bytes_accessed=bytes_accessed),
    )(A, Bt, xf)

    return out.reshape(N, C, Ho, Wo)


# ------------------------------------ pure-JAX reference ----------------------------------

def _ref_avg_pool_3x3_s2_p1(x: jnp.ndarray) -> jnp.ndarray:
    """Pure-JAX reference matching PyTorch AvgPool2d(3, 2, 1) (count_include_pad=True)."""
    N, C, H, W = x.shape
    Ho = (H - 1) // 2 + 1
    Wo = (W - 1) // 2 + 1
    xp = jnp.pad(x, ((0, 0), (0, 0), (1, 1), (1, 1)))
    acc = jnp.zeros((N, C, Ho, Wo), x.dtype)
    for di in range(3):
        for dj in range(3):
            acc = acc + xp[:, :, di:di + 2 * Ho - 1:2, dj:dj + 2 * Wo - 1:2]
    return acc / 9.0


if __name__ == "__main__":
    sampling_times = 2                            # InputProjectionA(samplingTimes=2)
    key = jax.random.PRNGKey(0)
    x = jax.random.normal(key, (2, 4, 16, 16), dtype=jnp.float32)   # NCHW input

    out = input_projection_a(x, sampling_times)
    out = jax.block_until_ready(out)

    # Correctness check against a pure-JAX reference of the PyTorch semantics.
    ref = x
    for _ in range(sampling_times):
        ref = _ref_avg_pool_3x3_s2_p1(ref)
    assert out.shape == (2, 4, 4, 4), out.shape
    assert jnp.allclose(out, ref, atol=5e-5, rtol=1e-5), "mismatch vs reference"

    print("KERNEL_OK")
</pallas_src>

<mosaic_0001>
module attributes {stable_mosaic.version = 11 : i64} {
  func.func @_pyramid_kernel(%arg0: i32, %arg1: memref<4x16xf32, #tpu.memory_space<vmem>>, %arg2: memref<16x4xf32, #tpu.memory_space<vmem>>, %arg3: memref<8x16x16xf32, #tpu.memory_space<vmem>>, %arg4: memref<8x4x4xf32, #tpu.memory_space<vmem>>) attributes {dimension_semantics = [#tpu.dimension_semantics<parallel>], iteration_bounds = array<i64: 1>, scalar_prefetch = 0 : i64, scratch_operands = 0 : i64, tpu.core_type = #tpu.core_type<tc>, window_params = [{pipeline_mode = #tpu.pipeline_mode<synchronous>, transform_indices = @transform_0, window_bounds = array<i64: 4, 16>}, {pipeline_mode = #tpu.pipeline_mode<synchronous>, transform_indices = @transform_1, window_bounds = array<i64: 16, 4>}, {transform_indices = @transform_2, window_bounds = array<i64: 8, 16, 16>}, {transform_indices = @transform_3, window_bounds = array<i64: 8, 4, 4>}]} {
    %c0 = arith.constant 0 : index
    %c0_0 = arith.constant 0 : index
    %c0_1 = arith.constant 0 : index
    %0 = vector.load %arg3[%c0, %c0_0, %c0_1] : memref<8x16x16xf32, #tpu.memory_space<vmem>>, vector<8x16x16xf32>
    %1 = vector.shape_cast %0 : vector<8x16x16xf32> to vector<128x16xf32>
    %c0_2 = arith.constant 0 : index
    %c0_3 = arith.constant 0 : index
    %2 = vector.load %arg2[%c0_2, %c0_3] : memref<16x4xf32, #tpu.memory_space<vmem>>, vector<16x4xf32>
    %cst = arith.constant dense<0.000000e+00> : vector<128x4xf32>
    %3 = tpu.matmul %1, %2, %cst {dimension_numbers = #tpu.dot_dimension_numbers<[1], [0], [0], [1], [0, 0, 1, 1], [], []>} : vector<128x16xf32>, vector<16x4xf32>, vector<128x4xf32> -> vector<128x4xf32>
    %4 = vector.shape_cast %3 : vector<128x4xf32> to vector<8x16x4xf32>
    %c0_4 = arith.constant 0 : index
    %c0_5 = arith.constant 0 : index
    %5 = vector.load %arg1[%c0_4, %c0_5] : memref<4x16xf32, #tpu.memory_space<vmem>>, vector<4x16xf32>
    %6 = vector.shape_cast %5 : vector<4x16xf32> to vector<1x4x16xf32>
    %7 = vector.broadcast %6 : vector<1x4x16xf32> to vector<8x4x16xf32>
    %cst_6 = arith.constant dense<0.000000e+00> : vector<8x4x4xf32>
    %8 = tpu.matmul %7, %4, %cst_6 {dimension_numbers = #tpu.dot_dimension_numbers<[2], [1], [1], [2], [0, 0, 0, 1, 1, 2], [0], [0]>} : vector<8x4x16xf32>, vector<8x16x4xf32>, vector<8x4x4xf32> -> vector<8x4x4xf32>
    %c0_7 = arith.constant 0 : index
    %c0_8 = arith.constant 0 : index
    %c0_9 = arith.constant 0 : index
    %9 = vector.load %arg4[%c0_7, %c0_8, %c0_9] : memref<8x4x4xf32, #tpu.memory_space<vmem>>, vector<8x4x4xf32>
    tpu.vector_store %arg4[%c0_7, %c0_8, %c0_9], %8 {strides = array<i32>} : memref<8x4x4xf32, #tpu.memory_space<vmem>>, vector<8x4x4xf32>,
    return
  }
  func.func @transform_0(%arg0: i32) -> (i32, i32) {
    %c0_i32 = arith.constant 0 : i32
    %c0_i32_0 = arith.constant 0 : i32
    %c0_i32_1 = arith.constant 0 : i32
    return %c0_i32, %c0_i32_0 : i32, i32
  }
  func.func @transform_1(%arg0: i32) -> (i32, i32) {
    %c0_i32 = arith.constant 0 : i32
    %c0_i32_0 = arith.constant 0 : i32
    %c0_i32_1 = arith.constant 0 : i32
    return %c0_i32, %c0_i32_0 : i32, i32
  }
  func.func @transform_2(%arg0: i32) -> (i32, i32, i32) {
    %c0_i32 = arith.constant 0 : i32
    %c0_i32_0 = arith.constant 0 : i32
    %c0_i32_1 = arith.constant 0 : i32
    return %arg0, %c0_i32, %c0_i32_0 : i32, i32, i32
  }
  func.func @transform_3(%arg0: i32) -> (i32, i32, i32) {
    %c0_i32 = arith.constant 0 : i32
    %c0_i32_0 = arith.constant 0 : i32
    %c0_i32_1 = arith.constant 0 : i32
    return %arg0, %c0_i32, %c0_i32_0 : i32, i32, i32
  }
}

</mosaic_0001>

<llo_original>
// kernel: tpu_custom_call.1
$region0: #{tpu_custom_call.1}
  #allocation0 [shape = 'u32[]', space=smem, size = 0x4, offset = 0x4, fixed_abs, tag = 'smem constant byte address 0x4 - core index']
  #allocation1 [shape = 'u32[144,128]{1,0:T(1,128)}', space=vmem, size = 0x12000, scoped, tag = 'internal scratch']
  %s0 = inlined_call_operand.vmem [shape: f32[4,16], index: 0, kind: input, shape index: {}]
  %s1 = inlined_call_operand.vmem [shape: f32[16,4], index: 1, kind: input, shape index: {}]
  %s2 = inlined_call_operand.hbm [shape: f32[8,16,16], index: 2, kind: input, shape index: {}]
  %s3 = inlined_call_operand.vmem [shape: f32[8,4,4], index: 3, kind: output, shape index: {}]
  %s4 = sld [smem:[#allocation0]]
  $region26: #{tpu_custom_call.1} parent=0
    _
  %s6 = ssub.s32 1, %s4
  %s7 = scalar_select 0, %s6, %s4
  $region1: #{tpu_custom_call.1} parent=0
    #allocation2 [shape = 'u8[65536]{0}', space=vmem, size = 0x10000, scoped, tag = 'input window, operand 2, single buffered']
    #allocation3 [shape = 's32[1]{0}', space=sflag, size = 0x4, scoped, tag = 'scoped memory for tpu_custom_call.1']
    %8 = vsyncpa [#allocation3], 0
    // Predicated region
    $region2: #{tpu_custom_call.1} parent=1 // pred_check
      _
    $region3: #{tpu_custom_call.1} parent=1 // pred_check_branch
      %10 = sbr.rel (0) target = $region5
    $region4: #{tpu_custom_call.1} parent=1 // pred_region
      _
    $region5: #{tpu_custom_call.1} parent=1 // pred_fallthru
      _
    // Predicated region
    $region6: #{tpu_custom_call.1} parent=1 // pred_check
      _
    $region7: #{tpu_custom_call.1} parent=1 // pred_check_branch
      %12 = sbr.rel (0) target = $region9
    $region8: #{tpu_custom_call.1} parent=1 // pred_region
      _
    $region9: #{tpu_custom_call.1} parent=1 // pred_fallthru
      _
    // Predicated region
    $region10: #{tpu_custom_call.1} parent=1 // pred_check
      _
    $region11: #{tpu_custom_call.1} parent=1 // pred_check_branch
      %14 = sbr.rel (0) target = $region13
    $region12: #{tpu_custom_call.1} parent=1 // pred_region
      %s16 = ssub.s32 2048, 2048
      %17 = vsyncadd [#allocation3], %s16
      %s18 = sshll.u32 [#allocation2], 4
      %s19 = int_to_ptr.vmem [resolvable:$true] %s18
      %24 = dma.hbm_to_vmem [thread:$0]  %s2, 2048, %s19, [#allocation3], 128, 128, 8
    $region13: #{tpu_custom_call.1} parent=1 // pred_fallthru
      _
    // Predicated region
    $region14: #{tpu_custom_call.1} parent=1 // pred_check
      _
    $region15: #{tpu_custom_call.1} parent=1 // pred_check_branch
      %26 = sbr.rel (0) target = $region17
    $region16: #{tpu_custom_call.1} parent=1 // pred_region
      %27 = dma.done [#allocation3], 2048
    $region17: #{tpu_custom_call.1} parent=1 // pred_fallthru
      _
    %v28 = vld [vmem:[#allocation2] sm:$0xff]
    %v29 = vld [vmem:[#allocation2 + $0x8] sm:$0xff]
    %v30 = vld [vmem:[#allocation2 + $0x10] sm:$0xff]
    %v31 = vld [vmem:[#allocation2 + $0x18] sm:$0xff]
    %v32 = vld [vmem:[#allocation2 + $0x20] sm:$0xff]
    %v33 = vld [vmem:[#allocation2 + $0x28] sm:$0xff]
    %v34 = vld [vmem:[#allocation2 + $0x30] sm:$0xff]
    %v35 = vld [vmem:[#allocation2 + $0x38] sm:$0xff]
    %v36 = vld [vmem:[#allocation2 + $0x40] sm:$0xff]
    %v37 = vld [vmem:[#allocation2 + $0x48] sm:$0xff]
    %v38 = vld [vmem:[#allocation2 + $0x50] sm:$0xff]
    %v39 = vld [vmem:[#allocation2 + $0x58] sm:$0xff]
    %v40 = vld [vmem:[#allocation2 + $0x60] sm:$0xff]
    %v41 = vld [vmem:[#allocation2 + $0x68] sm:$0xff]
    %v42 = vld [vmem:[#allocation2 + $0x70] sm:$0xff]
    %v43 = vld [vmem:[#allocation2 + $0x78] sm:$0xff]
    %v44 = vld [vmem:[%s1] sm:$0xff]
    %v45 = vld [vmem:[%s1 + $0x8] sm:$0xff]
    %vm46 = vcmask 130048
    %v48 = vsel %vm46, %v28, 0
    %v51 = vsel %vm46, %v29, 0
    %v54 = vsel %vm46, %v30, 0
    %v57 = vsel %vm46, %v31, 0
    %v60 = vsel %vm46, %v32, 0
    %v63 = vsel %vm46, %v33, 0
    %v66 = vsel %vm46, %v34, 0
    %v69 = vsel %vm46, %v35, 0
    %v72 = vsel %vm46, %v36, 0
    %v75 = vsel %vm46, %v37, 0
    %v78 = vsel %vm46, %v38, 0
    %v81 = vsel %vm46, %v39, 0
    %v84 = vsel %vm46, %v40, 0
    %v87 = vsel %vm46, %v41, 0
    %v90 = vsel %vm46, %v42, 0
    %v93 = vsel %vm46, %v43, 0
    %95 = vmatprep.subr.mxu0 0.0
    %96 = vmatpush1.msra.mxu0 %v44
    %97 = vmatprep.subr.mxu0 0.0
    %98 = vmatpush1.msra.mxu0 %v45
    %99 = vmatprep.subr.mxu0 0.0
    %100 = vmatpush1.msra.mxu0 0.0
    %101 = vmatprep.subr.mxu0 0.0
    %102 = vmatpush1.msra.mxu0 0.0
    %103 = vmatprep.subr.mxu0 0.0
    %104 = vmatpush1.msra.mxu0 0.0
    %105 = vmatprep.subr.mxu0 0.0
    %106 = vmatpush1.msra.mxu0 0.0
    %107 = vmatprep.subr.mxu0 0.0
    %108 = vmatpush1.msra.mxu0 0.0
    %109 = vmatprep.subr.mxu0 0.0
    %110 = vmatpush1.msra.mxu0 0.0
    %111 = vmatprep.subr.mxu0 0.0
    %112 = vmatpush1.msra.mxu0 0.0
    %113 = vmatprep.subr.mxu0 0.0
    %114 = vmatpush1.msra.mxu0 0.0
    %115 = vmatprep.subr.mxu0 0.0
    %116 = vmatpush1.msra.mxu0 0.0
    %117 = vmatprep.subr.mxu0 0.0
    %118 = vmatpush1.msra.mxu0 0.0
    %119 = vmatprep.subr.mxu0 0.0
    %120 = vmatpush1.msra.mxu0 0.0
    %121 = vmatprep.subr.mxu0 0.0
    %122 = vmatpush1.msra.mxu0 0.0
    %123 = vmatprep.subr.mxu0 0.0
    %124 = vmatpush1.msra.mxu0 0.0
    %125 = vmatprep.subr.mxu0 0.0
    %126 = vmatpush1.msra.mxu0 0.0
    %127 = vmatprep.subr.mxu0 0.0
    %128 = vmatpush1.msra.mxu0 0.0
    %129 = vmatprep.subr.mxu0 0.0
    %130 = vmatpush1.msra.mxu0 0.0
    %131 = vmatprep.subr.mxu0 0.0
    %132 = vmatpush1.msra.mxu0 0.0
    %133 = vmatprep.subr.mxu0 0.0
    %134 = vmatpush1.msra.mxu0 0.0
    %135 = vmatprep.subr.mxu0 0.0
    %136 = vmatpush1.msra.mxu0 0.0
    %137 = vmatprep.subr.mxu0 0.0
    %138 = vmatpush1.msra.mxu0 0.0
    %139 = vmatprep.subr.mxu0 0.0
    %140 = vmatpush1.msra.mxu0 0.0
    %141 = vmatprep.subr.mxu0 0.0
    %142 = vmatpush1.msra.mxu0 0.0
    %143 = vmatprep.subr.mxu0 0.0
    %144 = vmatpush1.msra.mxu0 0.0
    %145 = vmatprep.subr.mxu0 0.0
    %146 = vmatpush1.msra.mxu0 0.0
    %147 = vmatprep.subr.mxu0 0.0
    %148 = vmatpush1.msra.mxu0 0.0
    %149 = vmatprep.subr.mxu0 0.0
    %150 = vmatpush1.msra.mxu0 0.0
    %151 = vmatprep.subr.mxu0 0.0
    %152 = vmatpush1.msra.mxu0 0.0
    %153 = vmatprep.subr.mxu0 0.0
    %154 = vmatpush1.msra.mxu0 0.0
    %155 = vmatprep.subr.mxu0 0.0
    %156 = vmatpush1.msra.mxu0 0.0
    %157 = vmatprep.subr.mxu0 0.0
    %158 = vmatpush1.msra.mxu0 0.0
    %159 = vmatprep.mubr.f32.mxu0 0.0
    %160 = vmatmul.mubr.f32.gmra.mrb[0].mxu0 %v48
    %v161 = vpop.f32.mrb[0].mxu0
    %v162 = vadd.f32 0.0, %v161
    %v163 = vpop.f32.mrb[0].mxu0
    %164 = vmatprep.mubr.f32.mxu0 0.0
    %165 = vmatmul.mubr.f32.gmra.mrb[0].mxu0 %v51
    %v166 = vpop.f32.mrb[0].mxu0
    %v167 = vadd.f32 0.0, %v166
    %v168 = vpop.f32.mrb[0].mxu0
    %169 = vmatprep.mubr.f32.mxu0 0.0
    %170 = vmatmul.mubr.f32.gmra.mrb[0].mxu0 %v54
    %v171 = vpop.f32.mrb[0].mxu0
    %v172 = vadd.f32 0.0, %v171
    %v173 = vpop.f32.mrb[0].mxu0
    %174 = vmatprep.mubr.f32.mxu0 0.0
    %175 = vmatmul.mubr.f32.gmra.mrb[0].mxu0 %v57
    %v176 = vpop.f32.mrb[0].mxu0
    %v177 = vadd.f32 0.0, %v176
    %v178 = vpop.f32.mrb[0].mxu0
    %179 = vmatprep.mubr.f32.mxu0 0.0
    %180 = vmatmul.mubr.f32.gmra.mrb[0].mxu0 %v60
    %v181 = vpop.f32.mrb[0].mxu0
    %v182 = vadd.f32 0.0, %v181
    %v183 = vpop.f32.mrb[0].mxu0
    %184 = vmatprep.mubr.f32.mxu0 0.0
    %185 = vmatmul.mubr.f32.gmra.mrb[0].mxu0 %v63
    %v186 = vpop.f32.mrb[0].mxu0
    %v187 = vadd.f32 0.0, %v186
    %v188 = vpop.f32.mrb[0].mxu0
    %189 = vmatprep.mubr.f32.mxu0 0.0
    %190 = vmatmul.mubr.f32.gmra.mrb[0].mxu0 %v66
    %v191 = vpop.f32.mrb[0].mxu0
    %v192 = vadd.f32 0.0, %v191
    %v193 = vpop.f32.mrb[0].mxu0
    %194 = vmatprep.mubr.f32.mxu0 0.0
    %195 = vmatmul.mubr.f32.gmra.mrb[0].mxu0 %v69
    %v196 = vpop.f32.mrb[0].mxu0
    %v197 = vadd.f32 0.0, %v196
    %v198 = vpop.f32.mrb[0].mxu0
    %199 = vmatprep.mubr.f32.mxu0 0.0
    %200 = vmatmul.mubr.f32.gmra.mrb[0].mxu0 %v72
    %v201 = vpop.f32.mrb[0].mxu0
    %v202 = vadd.f32 0.0, %v201
    %v203 = vpop.f32.mrb[0].mxu0
    %204 = vmatprep.mubr.f32.mxu0 0.0
    %205 = vmatmul.mubr.f32.gmra.mrb[0].mxu0 %v75
    %v206 = vpop.f32.mrb[0].mxu0
    %v207 = vadd.f32 0.0, %v206
    %v208 = vpop.f32.mrb[0].mxu0
    %209 = vmatprep.mubr.f32.mxu0 0.0
    %210 = vmatmul.mubr.f32.gmra.mrb[0].mxu0 %v78
    %v211 = vpop.f32.mrb[0].mxu0
    %v212 = vadd.f32 0.0, %v211
    %v213 = vpop.f32.mrb[0].mxu0
    %214 = vmatprep.mubr.f32.mxu0 0.0
    %215 = vmatmul.mubr.f32.gmra.mrb[0].mxu0 %v81
    %v216 = vpop.f32.mrb[0].mxu0
    %v217 = vadd.f32 0.0, %v216
    %v218 = vpop.f32.mrb[0].mxu0
    %219 = vmatprep.mubr.f32.mxu0 0.0
    %220 = vmatmul.mubr.f32.gmra.mrb[0].mxu0 %v84
    %v221 = vpop.f32.mrb[0].mxu0
    %v222 = vadd.f32 0.0, %v221
    %v223 = vpop.f32.mrb[0].mxu0
    %224 = vmatprep.mubr.f32.mxu0 0.0
    %225 = vmatmul.mubr.f32.gmra.mrb[0].mxu0 %v87
    %v226 = vpop.f32.mrb[0].mxu0
    %v227 = vadd.f32 0.0, %v226
    %v228 = vpop.f32.mrb[0].mxu0
    %229 = vmatprep.mubr.f32.mxu0 0.0
    %230 = vmatmul.mubr.f32.gmra.mrb[0].mxu0 %v90
    %v231 = vpop.f32.mrb[0].mxu0
    %v232 = vadd.f32 0.0, %v231
    %v233 = vpop.f32.mrb[0].mxu0
    %234 = vmatprep.mubr.f32.mxu0 0.0
    %235 = vmatmul.mubr.f32.gmra.mrb[0].mxu0 %v93
    %v236 = vpop.f32.mrb[0].mxu0
    %v237 = vadd.f32 0.0, %v236
    %v238 = vpop.f32.mrb[0].mxu0
    %239 = vdwg.mxu0
    %v240 = vld [vmem:[%s0] sm:$0xf]
    %v242 = vsel %vm46, %v240, 0
    %244 = vmatprep.subr.mxu0 0.0
    %245 = vmatpush1.msra.mxu0 %v162
    %246 = vmatprep.subr.mxu0 0.0
    %247 = vmatpush1.msra.mxu0 %v167
    %248 = vmatprep.subr.mxu0 0.0
    %249 = vmatpush1.msra.mxu0 0.0
    %250 = vmatprep.subr.mxu0 0.0
    %251 = vmatpush1.msra.mxu0 0.0
    %252 = vmatprep.subr.mxu0 0.0
    %253 = vmatpush1.msra.mxu0 0.0
    %254 = vmatprep.subr.mxu0 0.0
    %255 = vmatpush1.msra.mxu0 0.0
    %256 = vmatprep.subr.mxu0 0.0
    %257 = vmatpush1.msra.mxu0 0.0
    %258 = vmatprep.subr.mxu0 0.0
    %259 = vmatpush1.msra.mxu0 0.0
    %260 = vmatprep.subr.mxu0 0.0
    %261 = vmatpush1.msra.mxu0 0.0
    %262 = vmatprep.subr.mxu0 0.0
    %263 = vmatpush1.msra.mxu0 0.0
    %264 = vmatprep.subr.mxu0 0.0
    %265 = vmatpush1.msra.mxu0 0.0
    %266 = vmatprep.subr.mxu0 0.0
    %267 = vmatpush1.msra.mxu0 0.0
    %268 = vmatprep.subr.mxu0 0.0
    %269 = vmatpush1.msra.mxu0 0.0
    %270 = vmatprep.subr.mxu0 0.0
    %271 = vmatpush1.msra.mxu0 0.0
    %272 = vmatprep.subr.mxu0 0.0
    %273 = vmatpush1.msra.mxu0 0.0
    %274 = vmatprep.subr.mxu0 0.0
    %275 = vmatpush1.msra.mxu0 0.0
    %276 = vmatprep.subr.mxu0 0.0
    %277 = vmatpush1.msra.mxu0 0.0
    %278 = vmatprep.subr.mxu0 0.0
    %279 = vmatpush1.msra.mxu0 0.0
    %280 = vmatprep.subr.mxu0 0.0
    %281 = vmatpush1.msra.mxu0 0.0
    %282 = vmatprep.subr.mxu0 0.0
    %283 = vmatpush1.msra.mxu0 0.0
    %284 = vmatprep.subr.mxu0 0.0
    %285 = vmatpush1.msra.mxu0 0.0
    %286 = vmatprep.subr.mxu0 0.0
    %287 = vmatpush1.msra.mxu0 0.0
    %288 = vmatprep.subr.mxu0 0.0
    %289 = vmatpush1.msra.mxu0 0.0
    %290 = vmatprep.subr.mxu0 0.0
    %291 = vmatpush1.msra.mxu0 0.0
    %292 = vmatprep.subr.mxu0 0.0
    %293 = vmatpush1.msra.mxu0 0.0
    %294 = vmatprep.subr.mxu0 0.0
    %295 = vmatpush1.msra.mxu0 0.0
    %296 = vmatprep.subr.mxu0 0.0
    %297 = vmatpush1.msra.mxu0 0.0
    %298 = vmatprep.subr.mxu0 0.0
    %299 = vmatpush1.msra.mxu0 0.0
    %300 = vmatprep.subr.mxu0 0.0
    %301 = vmatpush1.msra.mxu0 0.0
    %302 = vmatprep.subr.mxu0 0.0
    %303 = vmatpush1.msra.mxu0 0.0
    %304 = vmatprep.subr.mxu0 0.0
    %305 = vmatpush1.msra.mxu0 0.0
    %306 = vmatprep.subr.mxu0 0.0
    %307 = vmatpush1.msra.mxu0 0.0
    %308 = vmatprep.mubr.f32.mxu0 0.0
    %309 = vmatmul.mubr.f32.gmra.mrb[0].mxu0 %v242
    %v310 = vpop.f32.mrb[0].mxu0
    %v311 = vadd.f32 0.0, %v310
    %v312 = vpop.f32.mrb[0].mxu0
    %313 = vdwg.mxu0
    %314 = vmatprep.subr.mxu0 0.0
    %315 = vmatpush1.msra.mxu0 %v172
    %316 = vmatprep.subr.mxu0 0.0
    %317 = vmatpush1.msra.mxu0 %v177
    %318 = vmatprep.subr.mxu0 0.0
    %319 = vmatpush1.msra.mxu0 0.0
    %320 = vmatprep.subr.mxu0 0.0
    %321 = vmatpush1.msra.mxu0 0.0
    %322 = vmatprep.subr.mxu0 0.0
    %323 = vmatpush1.msra.mxu0 0.0
    %324 = vmatprep.subr.mxu0 0.0
    %325 = vmatpush1.msra.mxu0 0.0
    %326 = vmatprep.subr.mxu0 0.0
    %327 = vmatpush1.msra.mxu0 0.0
    %328 = vmatprep.subr.mxu0 0.0
    %329 = vmatpush1.msra.mxu0 0.0
    %330 = vmatprep.subr.mxu0 0.0
    %331 = vmatpush1.msra.mxu0 0.0
    %332 = vmatprep.subr.mxu0 0.0
    %333 = vmatpush1.msra.mxu0 0.0
    %334 = vmatprep.subr.mxu0 0.0
    %335 = vmatpush1.msra.mxu0 0.0
    %336 = vmatprep.subr.mxu0 0.0
    %337 = vmatpush1.msra.mxu0 0.0
    %338 = vmatprep.subr.mxu0 0.0
    %339 = vmatpush1.msra.mxu0 0.0
    %340 = vmatprep.subr.mxu0 0.0
    %341 = vmatpush1.msra.mxu0 0.0
    %342 = vmatprep.subr.mxu0 0.0
    %343 = vmatpush1.msra.mxu0 0.0
    %344 = vmatprep.subr.mxu0 0.0
    %345 = vmatpush1.msra.mxu0 0.0
    %346 = vmatprep.subr.mxu0 0.0
    %347 = vmatpush1.msra.mxu0 0.0
    %348 = vmatprep.subr.mxu0 0.0
    %349 = vmatpush1.msra.mxu0 0.0
    %350 = vmatprep.subr.mxu0 0.0
    %351 = vmatpush1.msra.mxu0 0.0
    %352 = vmatprep.subr.mxu0 0.0
    %353 = vmatpush1.msra.mxu0 0.0
    %354 = vmatprep.subr.mxu0 0.0
    %355 = vmatpush1.msra.mxu0 0.0
    %356 = vmatprep.subr.mxu0 0.0
    %357 = vmatpush1.msra.mxu0 0.0
    %358 = vmatprep.subr.mxu0 0.0
    %359 = vmatpush1.msra.mxu0 0.0
    %360 = vmatprep.subr.mxu0 0.0
    %361 = vmatpush1.msra.mxu0 0.0
    %362 = vmatprep.subr.mxu0 0.0
    %363 = vmatpush1.msra.mxu0 0.0
    %364 = vmatprep.subr.mxu0 0.0
    %365 = vmatpush1.msra.mxu0 0.0
    %366 = vmatprep.subr.mxu0 0.0
    %367 = vmatpush1.msra.mxu0 0.0
    %368 = vmatprep.subr.mxu0 0.0
    %369 = vmatpush1.msra.mxu0 0.0
    %370 = vmatprep.subr.mxu0 0.0
    %371 = vmatpush1.msra.mxu0 0.0
    %372 = vmatprep.subr.mxu0 0.0
    %373 = vmatpush1.msra.mxu0 0.0
    %374 = vmatprep.subr.mxu0 0.0
    %375 = vmatpush1.msra.mxu0 0.0
    %376 = vmatprep.subr.mxu0 0.0
    %377 = vmatpush1.msra.mxu0 0.0
    %378 = vmatprep.mubr.f32.mxu0 0.0
    %379 = vmatmul.mubr.f32.gmra.mrb[0].mxu0 %v242
    %v380 = vpop.f32.mrb[0].mxu0
    %v381 = vadd.f32 0.0, %v380
    %v382 = vpop.f32.mrb[0].mxu0
    %383 = vdwg.mxu0
    %384 = vmatprep.subr.mxu0 0.0
    %385 = vmatpush1.msra.mxu0 %v182
    %386 = vmatprep.subr.mxu0 0.0
    %387 = vmatpush1.msra.mxu0 %v187
    %388 = vmatprep.subr.mxu0 0.0
    %389 = vmatpush1.msra.mxu0 0.0
    %390 = vmatprep.subr.mxu0 0.0
    %391 = vmatpush1.msra.mxu0 0.0
    %392 = vmatprep.subr.mxu0 0.0
    %393 = vmatpush1.msra.mxu0 0.0
    %394 = vmatprep.subr.mxu0 0.0
    %395 = vmatpush1.msra.mxu0 0.0
    %396 = vmatprep.subr.mxu0 0.0
    %397 = vmatpush1.msra.mxu0 0.0
    %398 = vmatprep.subr.mxu0 0.0
    %399 = vmatpush1.msra.mxu0 0.0
    %400 = vmatprep.subr.mxu0 0.0
    %401 = vmatpush1.msra.mxu0 0.0
    %402 = vmatprep.subr.mxu0 0.0
    %403 = vmatpush1.msra.mxu0 0.0
    %404 = vmatprep.subr.mxu0 0.0
    %405 = vmatpush1.msra.mxu0 0.0
    %406 = vmatprep.subr.mxu0 0.0
    %407 = vmatpush1.msra.mxu0 0.0
    %408 = vmatprep.subr.mxu0 0.0
    %409 = vmatpush1.msra.mxu0 0.0
    %410 = vmatprep.subr.mxu0 0.0
    %411 = vmatpush1.msra.mxu0 0.0
    %412 = vmatprep.subr.mxu0 0.0
    %413 = vmatpush1.msra.mxu0 0.0
    %414 = vmatprep.subr.mxu0 0.0
    %415 = vmatpush1.msra.mxu0 0.0
    %416 = vmatprep.subr.mxu0 0.0
    %417 = vmatpush1.msra.mxu0 0.0
    %418 = vmatprep.subr.mxu0 0.0
    %419 = vmatpush1.msra.mxu0 0.0
    %420 = vmatprep.subr.mxu0 0.0
    %421 = vmatpush1.msra.mxu0 0.0
    %422 = vmatprep.subr.mxu0 0.0
    %423 = vmatpush1.msra.mxu0 0.0
    %424 = vmatprep.subr.mxu0 0.0
    %425 = vmatpush1.msra.mxu0 0.0
    %426 = vmatprep.subr.mxu0 0.0
    %427 = vmatpush1.msra.mxu0 0.0
    %428 = vmatprep.subr.mxu0 0.0
    %429 = vmatpush1.msra.mxu0 0.0
    %430 = vmatprep.subr.mxu0 0.0
    %431 = vmatpush1.msra.mxu0 0.0
    %432 = vmatprep.subr.mxu0 0.0
    %433 = vmatpush1.msra.mxu0 0.0
    %434 = vmatprep.subr.mxu0 0.0
    %435 = vmatpush1.msra.mxu0 0.0
    %436 = vmatprep.subr.mxu0 0.0
    %437 = vmatpush1.msra.mxu0 0.0
    %438 = vmatprep.subr.mxu0 0.0
    %439 = vmatpush1.msra.mxu0 0.0
    %440 = vmatprep.subr.mxu0 0.0
    %441 = vmatpush1.msra.mxu0 0.0
    %442 = vmatprep.subr.mxu0 0.0
    %443 = vmatpush1.msra.mxu0 0.0
    %444 = vmatprep.subr.mxu0 0.0
    %445 = vmatpush1.msra.mxu0 0.0
    %446 = vmatprep.subr.mxu0 0.0
    %447 = vmatpush1.msra.mxu0 0.0
    %448 = vmatprep.mubr.f32.mxu0 0.0
    %449 = vmatmul.mubr.f32.gmra.mrb[0].mxu0 %v242
    %v450 = vpop.f32.mrb[0].mxu0
    %v451 = vadd.f32 0.0, %v450
    %v452 = vpop.f32.mrb[0].mxu0
    %453 = vdwg.mxu0
    %454 = vmatprep.subr.mxu0 0.0
    %455 = vmatpush1.msra.mxu0 %v192
    %456 = vmatprep.subr.mxu0 0.0
    %457 = vmatpush1.msra.mxu0 %v197
    %458 = vmatprep.subr.mxu0 0.0
    %459 = vmatpush1.msra.mxu0 0.0
    %460 = vmatprep.subr.mxu0 0.0
    %461 = vmatpush1.msra.mxu0 0.0
    %462 = vmatprep.subr.mxu0 0.0
    %463 = vmatpush1.msra.mxu0 0.0
    %464 = vmatprep.subr.mxu0 0.0
    %465 = vmatpush1.msra.mxu0 0.0
    %466 = vmatprep.subr.mxu0 0.0
    %467 = vmatpush1.msra.mxu0 0.0
    %468 = vmatprep.subr.mxu0 0.0
    %469 = vmatpush1.msra.mxu0 0.0
    %470 = vmatprep.subr.mxu0 0.0
    %471 = vmatpush1.msra.mxu0 0.0
    %472 = vmatprep.subr.mxu0 0.0
    %473 = vmatpush1.msra.mxu0 0.0
    %474 = vmatprep.subr.mxu0 0.0
    %475 = vmatpush1.msra.mxu0 0.0
    %476 = vmatprep.subr.mxu0 0.0
    %477 = vmatpush1.msra.mxu0 0.0
    %478 = vmatprep.subr.mxu0 0.0
    %479 = vmatpush1.msra.mxu0 0.0
    %480 = vmatprep.subr.mxu0 0.0
    %481 = vmatpush1.msra.mxu0 0.0
    %482 = vmatprep.subr.mxu0 0.0
    %483 = vmatpush1.msra.mxu0 0.0
    %484 = vmatprep.subr.mxu0 0.0
    %485 = vmatpush1.msra.mxu0 0.0
    %486 = vmatprep.subr.mxu0 0.0
    %487 = vmatpush1.msra.mxu0 0.0
    %488 = vmatprep.subr.mxu0 0.0
    %489 = vmatpush1.msra.mxu0 0.0
    %490 = vmatprep.subr.mxu0 0.0
    %491 = vmatpush1.msra.mxu0 0.0
    %492 = vmatprep.subr.mxu0 0.0
    %493 = vmatpush1.msra.mxu0 0.0
    %494 = vmatprep.subr.mxu0 0.0
    %495 = vmatpush1.msra.mxu0 0.0
    %496 = vmatprep.subr.mxu0 0.0
    %497 = vmatpush1.msra.mxu0 0.0
    %498 = vmatprep.subr.mxu0 0.0
    %499 = vmatpush1.msra.mxu0 0.0
    %500 = vmatprep.subr.mxu0 0.0
    %501 = vmatpush1.msra.mxu0 0.0
    %502 = vmatprep.subr.mxu0 0.0
    %503 = vmatpush1.msra.mxu0 0.0
    %504 = vmatprep.subr.mxu0 0.0
    %505 = vmatpush1.msra.mxu0 0.0
    %506 = vmatprep.subr.mxu0 0.0
    %507 = vmatpush1.msra.mxu0 0.0
    %508 = vmatprep.subr.mxu0 0.0
    %509 = vmatpush1.msra.mxu0 0.0
    %510 = vmatprep.subr.mxu0 0.0
    %511 = vmatpush1.msra.mxu0 0.0
    %512 = vmatprep.subr.mxu0 0.0
    %513 = vmatpush1.msra.mxu0 0.0
    %514 = vmatprep.subr.mxu0 0.0
    %515 = vmatpush1.msra.mxu0 0.0
    %516 = vmatprep.subr.mxu0 0.0
    %517 = vmatpush1.msra.mxu0 0.0
    %518 = vmatprep.mubr.f32.mxu0 0.0
    %519 = vmatmul.mubr.f32.gmra.mrb[0].mxu0 %v242
    %v520 = vpop.f32.mrb[0].mxu0
    %v521 = vadd.f32 0.0, %v520
    %v522 = vpop.f32.mrb[0].mxu0
    %523 = vdwg.mxu0
    %524 = vmatprep.subr.mxu0 0.0
    %525 = vmatpush1.msra.mxu0 %v202
    %526 = vmatprep.subr.mxu0 0.0
    %527 = vmatpush1.msra.mxu0 %v207
    %528 = vmatprep.subr.mxu0 0.0
    %529 = vmatpush1.msra.mxu0 0.0
    %530 = vmatprep.subr.mxu0 0.0
    %531 = vmatpush1.msra.mxu0 0.0
    %532 = vmatprep.subr.mxu0 0.0
    %533 = vmatpush1.msra.mxu0 0.0
    %534 = vmatprep.subr.mxu0 0.0
    %535 = vmatpush1.msra.mxu0 0.0
    %536 = vmatprep.subr.mxu0 0.0
    %537 = vmatpush1.msra.mxu0 0.0
    %538 = vmatprep.subr.mxu0 0.0
    %539 = vmatpush1.msra.mxu0 0.0
    %540 = vmatprep.subr.mxu0 0.0
    %541 = vmatpush1.msra.mxu0 0.0
    %542 = vmatprep.subr.mxu0 0.0
    %543 = vmatpush1.msra.mxu0 0.0
    %544 = vmatprep.subr.mxu0 0.0
    %545 = vmatpush1.msra.mxu0 0.0
    %546 = vmatprep.subr.mxu0 0.0
    %547 = vmatpush1.msra.mxu0 0.0
    %548 = vmatprep.subr.mxu0 0.0
    %549 = vmatpush1.msra.mxu0 0.0
    %550 = vmatprep.subr.mxu0 0.0
    %551 = vmatpush1.msra.mxu0 0.0
    %552 = vmatprep.subr.mxu0 0.0
    %553 = vmatpush1.msra.mxu0 0.0
    %554 = vmatprep.subr.mxu0 0.0
    %555 = vmatpush1.msra.mxu0 0.0
    %556 = vmatprep.subr.mxu0 0.0
    %557 = vmatpush1.msra.mxu0 0.0
    %558 = vmatprep.subr.mxu0 0.0
    %559 = vmatpush1.msra.mxu0 0.0
    %560 = vmatprep.subr.mxu0 0.0
    %561 = vmatpush1.msra.mxu0 0.0
    %562 = vmatprep.subr.mxu0 0.0
    %563 = vmatpush1.msra.mxu0 0.0
    %564 = vmatprep.subr.mxu0 0.0
    %565 = vmatpush1.msra.mxu0 0.0
    %566 = vmatprep.subr.mxu0 0.0
    %567 = vmatpush1.msra.mxu0 0.0
    %568 = vmatprep.subr.mxu0 0.0
    %569 = vmatpush1.msra.mxu0 0.0
    %570 = vmatprep.subr.mxu0 0.0
    %571 = vmatpush1.msra.mxu0 0.0
    %572 = vmatprep.subr.mxu0 0.0
    %573 = vmatpush1.msra.mxu0 0.0
    %574 = vmatprep.subr.mxu0 0.0
    %575 = vmatpush1.msra.mxu0 0.0
    %576 = vmatprep.subr.mxu0 0.0
    %577 = vmatpush1.msra.mxu0 0.0
    %578 = vmatprep.subr.mxu0 0.0
    %579 = vmatpush1.msra.mxu0 0.0
    %580 = vmatprep.subr.mxu0 0.0
    %581 = vmatpush1.msra.mxu0 0.0
    %582 = vmatprep.subr.mxu0 0.0
    %583 = vmatpush1.msra.mxu0 0.0
    %584 = vmatprep.subr.mxu0 0.0
    %585 = vmatpush1.msra.mxu0 0.0
    %586 = vmatprep.subr.mxu0 0.0
    %587 = vmatpush1.msra.mxu0 0.0
    %588 = vmatprep.mubr.f32.mxu0 0.0
    %589 = vmatmul.mubr.f32.gmra.mrb[0].mxu0 %v242
    %v590 = vpop.f32.mrb[0].mxu0
    %v591 = vadd.f32 0.0, %v590
    %v592 = vpop.f32.mrb[0].mxu0
    %593 = vdwg.mxu0
    %594 = vmatprep.subr.mxu0 0.0
    %595 = vmatpush1.msra.mxu0 %v212
    %596 = vmatprep.subr.mxu0 0.0
    %597 = vmatpush1.msra.mxu0 %v217
    %598 = vmatprep.subr.mxu0 0.0
    %599 = vmatpush1.msra.mxu0 0.0
    %600 = vmatprep.subr.mxu0 0.0
    %601 = vmatpush1.msra.mxu0 0.0
    %602 = vmatprep.subr.mxu0 0.0
    %603 = vmatpush1.msra.mxu0 0.0
    %604 = vmatprep.subr.mxu0 0.0
    %605 = vmatpush1.msra.mxu0 0.0
    %606 = vmatprep.subr.mxu0 0.0
    %607 = vmatpush1.msra.mxu0 0.0
    %608 = vmatprep.subr.mxu0 0.0
    %609 = vmatpush1.msra.mxu0 0.0
    %610 = vmatprep.subr.mxu0 0.0
    %611 = vmatpush1.msra.mxu0 0.0
    %612 = vmatprep.subr.mxu0 0.0
    %613 = vmatpush1.msra.mxu0 0.0
    %614 = vmatprep.subr.mxu0 0.0
    %615 = vmatpush1.msra.mxu0 0.0
    %616 = vmatprep.subr.mxu0 0.0
    %617 = vmatpush1.msra.mxu0 0.0
    %618 = vmatprep.subr.mxu0 0.0
    %619 = vmatpush1.msra.mxu0 0.0
    %620 = vmatprep.subr.mxu0 0.0
    %621 = vmatpush1.msra.mxu0 0.0
    %622 = vmatprep.subr.mxu0 0.0
    %623 = vmatpush1.msra.mxu0 0.0
    %624 = vmatprep.subr.mxu0 0.0
    %625 = vmatpush1.msra.mxu0 0.0
    %626 = vmatprep.subr.mxu0 0.0
    %627 = vmatpush1.msra.mxu0 0.0
    %628 = vmatprep.subr.mxu0 0.0
    %629 = vmatpush1.msra.mxu0 0.0
    %630 = vmatprep.subr.mxu0 0.0
    %631 = vmatpush1.msra.mxu0 0.0
    %632 = vmatprep.subr.mxu0 0.0
    %633 = vmatpush1.msra.mxu0 0.0
    %634 = vmatprep.subr.mxu0 0.0
    %635 = vmatpush1.msra.mxu0 0.0
    %636 = vmatprep.subr.mxu0 0.0
    %637 = vmatpush1.msra.mxu0 0.0
    %638 = vmatprep.subr.mxu0 0.0
    %639 = vmatpush1.msra.mxu0 0.0
    %640 = vmatprep.subr.mxu0 0.0
    %641 = vmatpush1.msra.mxu0 0.0
    %642 = vmatprep.subr.mxu0 0.0
    %643 = vmatpush1.msra.mxu0 0.0
    %644 = vmatprep.subr.mxu0 0.0
    %645 = vmatpush1.msra.mxu0 0.0
    %646 = vmatprep.subr.mxu0 0.0
    %647 = vmatpush1.msra.mxu0 0.0
    %648 = vmatprep.subr.mxu0 0.0
    %649 = vmatpush1.msra.mxu0 0.0
    %650 = vmatprep.subr.mxu0 0.0
    %651 = vmatpush1.msra.mxu0 0.0
    %652 = vmatprep.subr.mxu0 0.0
    %653 = vmatpush1.msra.mxu0 0.0
    %654 = vmatprep.subr.mxu0 0.0
    %655 = vmatpush1.msra.mxu0 0.0
    %656 = vmatprep.subr.mxu0 0.0
    %657 = vmatpush1.msra.mxu0 0.0
    %658 = vmatprep.mubr.f32.mxu0 0.0
    %659 = vmatmul.mubr.f32.gmra.mrb[0].mxu0 %v242
    %v660 = vpop.f32.mrb[0].mxu0
    %v661 = vadd.f32 0.0, %v660
    %v662 = vpop.f32.mrb[0].mxu0
    %663 = vdwg.mxu0
    %664 = vmatprep.subr.mxu0 0.0
    %665 = vmatpush1.msra.mxu0 %v222
    %666 = vmatprep.subr.mxu0 0.0
    %667 = vmatpush1.msra.mxu0 %v227
    %668 = vmatprep.subr.mxu0 0.0
    %669 = vmatpush1.msra.mxu0 0.0
    %670 = vmatprep.subr.mxu0 0.0
    %671 = vmatpush1.msra.mxu0 0.0
    %672 = vmatprep.subr.mxu0 0.0
    %673 = vmatpush1.msra.mxu0 0.0
    %674 = vmatprep.subr.mxu0 0.0
    %675 = vmatpush1.msra.mxu0 0.0
    %676 = vmatprep.subr.mxu0 0.0
    %677 = vmatpush1.msra.mxu0 0.0
    %678 = vmatprep.subr.mxu0 0.0
    %679 = vmatpush1.msra.mxu0 0.0
    %680 = vmatprep.subr.mxu0 0.0
    %681 = vmatpush1.msra.mxu0 0.0
    %682 = vmatprep.subr.mxu0 0.0
    %683 = vmatpush1.msra.mxu0 0.0
    %684 = vmatprep.subr.mxu0 0.0
    %685 = vmatpush1.msra.mxu0 0.0
    %686 = vmatprep.subr.mxu0 0.0
    %687 = vmatpush1.msra.mxu0 0.0
    %688 = vmatprep.subr.mxu0 0.0
    %689 = vmatpush1.msra.mxu0 0.0
    %690 = vmatprep.subr.mxu0 0.0
    %691 = vmatpush1.msra.mxu0 0.0
    %692 = vmatprep.subr.mxu0 0.0
    %693 = vmatpush1.msra.mxu0 0.0
    %694 = vmatprep.subr.mxu0 0.0
    %695 = vmatpush1.msra.mxu0 0.0
    %696 = vmatprep.subr.mxu0 0.0
    %697 = vmatpush1.msra.mxu0 0.0
    %698 = vmatprep.subr.mxu0 0.0
    %699 = vmatpush1.msra.mxu0 0.0
    %700 = vmatprep.subr.mxu0 0.0
    %701 = vmatpush1.msra.mxu0 0.0
    %702 = vmatprep.subr.mxu0 0.0
    %703 = vmatpush1.msra.mxu0 0.0
    %704 = vmatprep.subr.mxu0 0.0
    %705 = vmatpush1.msra.mxu0 0.0
    %706 = vmatprep.subr.mxu0 0.0
    %707 = vmatpush1.msra.mxu0 0.0
    %708 = vmatprep.subr.mxu0 0.0
    %709 = vmatpush1.msra.mxu0 0.0
    %710 = vmatprep.subr.mxu0 0.0
    %711 = vmatpush1.msra.mxu0 0.0
    %712 = vmatprep.subr.mxu0 0.0
    %713 = vmatpush1.msra.mxu0 0.0
    %714 = vmatprep.subr.mxu0 0.0
    %715 = vmatpush1.msra.mxu0 0.0
    %716 = vmatprep.subr.mxu0 0.0
    %717 = vmatpush1.msra.mxu0 0.0
    %718 = vmatprep.subr.mxu0 0.0
    %719 = vmatpush1.msra.mxu0 0.0
    %720 = vmatprep.subr.mxu0 0.0
    %721 = vmatpush1.msra.mxu0 0.0
    %722 = vmatprep.subr.mxu0 0.0
    %723 = vmatpush1.msra.mxu0 0.0
    %724 = vmatprep.subr.mxu0 0.0
    %725 = vmatpush1.msra.mxu0 0.0
    %726 = vmatprep.subr.mxu0 0.0
    %727 = vmatpush1.msra.mxu0 0.0
    %728 = vmatprep.mubr.f32.mxu0 0.0
    %729 = vmatmul.mubr.f32.gmra.mrb[0].mxu0 %v242
    %v730 = vpop.f32.mrb[0].mxu0
    %v731 = vadd.f32 0.0, %v730
    %v732 = vpop.f32.mrb[0].mxu0
    %733 = vdwg.mxu0
    %734 = vmatprep.subr.mxu0 0.0
    %735 = vmatpush1.msra.mxu0 %v232
    %736 = vmatprep.subr.mxu0 0.0
    %737 = vmatpush1.msra.mxu0 %v237
    %738 = vmatprep.subr.mxu0 0.0
    %739 = vmatpush1.msra.mxu0 0.0
    %740 = vmatprep.subr.mxu0 0.0
    %741 = vmatpush1.msra.mxu0 0.0
    %742 = vmatprep.subr.mxu0 0.0
    %743 = vmatpush1.msra.mxu0 0.0
    %744 = vmatprep.subr.mxu0 0.0
    %745 = vmatpush1.msra.mxu0 0.0
    %746 = vmatprep.subr.mxu0 0.0
    %747 = vmatpush1.msra.mxu0 0.0
    %748 = vmatprep.subr.mxu0 0.0
    %749 = vmatpush1.msra.mxu0 0.0
    %750 = vmatprep.subr.mxu0 0.0
    %751 = vmatpush1.msra.mxu0 0.0
    %752 = vmatprep.subr.mxu0 0.0
    %753 = vmatpush1.msra.mxu0 0.0
    %754 = vmatprep.subr.mxu0 0.0
    %755 = vmatpush1.msra.mxu0 0.0
    %756 = vmatprep.subr.mxu0 0.0
    %757 = vmatpush1.msra.mxu0 0.0
    %758 = vmatprep.subr.mxu0 0.0
    %759 = vmatpush1.msra.mxu0 0.0
    %760 = vmatprep.subr.mxu0 0.0
    %761 = vmatpush1.msra.mxu0 0.0
    %762 = vmatprep.subr.mxu0 0.0
    %763 = vmatpush1.msra.mxu0 0.0
    %764 = vmatprep.subr.mxu0 0.0
    %765 = vmatpush1.msra.mxu0 0.0
    %766 = vmatprep.subr.mxu0 0.0
    %767 = vmatpush1.msra.mxu0 0.0
    %768 = vmatprep.subr.mxu0 0.0
    %769 = vmatpush1.msra.mxu0 0.0
    %770 = vmatprep.subr.mxu0 0.0
    %771 = vmatpush1.msra.mxu0 0.0
    %772 = vmatprep.subr.mxu0 0.0
    %773 = vmatpush1.msra.mxu0 0.0
    %774 = vmatprep.subr.mxu0 0.0
    %775 = vmatpush1.msra.mxu0 0.0
    %776 = vmatprep.subr.mxu0 0.0
    %777 = vmatpush1.msra.mxu0 0.0
    %778 = vmatprep.subr.mxu0 0.0
    %779 = vmatpush1.msra.mxu0 0.0
    %780 = vmatprep.subr.mxu0 0.0
    %781 = vmatpush1.msra.mxu0 0.0
    %782 = vmatprep.subr.mxu0 0.0
    %783 = vmatpush1.msra.mxu0 0.0
    %784 = vmatprep.subr.mxu0 0.0
    %785 = vmatpush1.msra.mxu0 0.0
    %786 = vmatprep.subr.mxu0 0.0
    %787 = vmatpush1.msra.mxu0 0.0
    %788 = vmatprep.subr.mxu0 0.0
    %789 = vmatpush1.msra.mxu0 0.0
    %790 = vmatprep.subr.mxu0 0.0
    %791 = vmatpush1.msra.mxu0 0.0
    %792 = vmatprep.subr.mxu0 0.0
    %793 = vmatpush1.msra.mxu0 0.0
    %794 = vmatprep.subr.mxu0 0.0
    %795 = vmatpush1.msra.mxu0 0.0
    %796 = vmatprep.subr.mxu0 0.0
    %797 = vmatpush1.msra.mxu0 0.0
    %798 = vmatprep.mubr.f32.mxu0 0.0
    %799 = vmatmul.mubr.f32.gmra.mrb[0].mxu0 %v242
    %v800 = vpop.f32.mrb[0].mxu0
    %v801 = vadd.f32 0.0, %v800
    %v802 = vpop.f32.mrb[0].mxu0
    %803 = vdwg.mxu0
    %vm804 = vcmask 27648
    %805 = vst.msk [vmem:[%s3] sm:$0xf] %vm804, %v311
    %806 = vst.msk [vmem:[%s3 + $0x4] sm:$0xf] %vm804, %v381
    %807 = vst.msk [vmem:[%s3 + $0x8] sm:$0xf] %vm804, %v451
    %808 = vst.msk [vmem:[%s3 + $0xc] sm:$0xf] %vm804, %v521
    %809 = vst.msk [vmem:[%s3 + $0x10] sm:$0xf] %vm804, %v591
    %810 = vst.msk [vmem:[%s3 + $0x14] sm:$0xf] %vm804, %v661
    %811 = vst.msk [vmem:[%s3 + $0x18] sm:$0xf] %vm804, %v731
    %812 = vst.msk [vmem:[%s3 + $0x1c] sm:$0xf] %vm804, %v801
    // Predicated region
    $region18: #{tpu_custom_call.1} parent=1 // pred_check
      _
    $region19: #{tpu_custom_call.1} parent=1 // pred_check_branch
      %814 = sbr.rel (0) target = $region21
    $region20: #{tpu_custom_call.1} parent=1 // pred_region
      _
    $region21: #{tpu_custom_call.1} parent=1 // pred_fallthru
      _
    // Predicated region
    $region22: #{tpu_custom_call.1} parent=1 // pred_check
      _
    $region23: #{tpu_custom_call.1} parent=1 // pred_check_branch
      %816 = sbr.rel (0) target = $region25
    $region24: #{tpu_custom_call.1} parent=1 // pred_region
      _
    $region25: #{tpu_custom_call.1} parent=1 // pred_fallthru
      _
    %817 = vsyncpa [#allocation3], 1

</llo_original>
